<compile_context>
chip_gen: v7x
topology: tpu7x:2x2x1
jax: 0.10.0
libtpu: 0.0.40
codegen_flags: <defaults>
</compile_context>

<pallas_src>
import functools

import jax
import jax.numpy as jnp
from jax import lax
from jax.experimental import pallas as pl
from jax.experimental.pallas import tpu as pltpu

# Deterministic "parameters" from InputGroup.__init__ (no learned weights).
DT = 1e-6             # self.dt
PULSE_WIDTH = 4.5e-5  # self.pulse_width
TSIM = 0.001          # self.Tsim (unused in forward, kept for fidelity)

_VMEM_BUDGET = 24 * 1024 * 1024   # target pipelined working set (all buffers)
_KC_DEFAULT = 128                 # default steps per chunk (review: 64-128)

_VMEM_LIMIT_CACHE = None


def _vmem_limit_bytes():
    """Device VMEM capacity minus ~16 MiB headroom (~48 MiB on v7x)."""
    global _VMEM_LIMIT_CACHE
    if _VMEM_LIMIT_CACHE is None:
        cap = 64 * 1024 * 1024   # conservative default: v7x per-TC VMEM
        try:
            cap = int(getattr(pltpu.get_tpu_info(), "vmem_capacity_bytes", cap))
        except Exception:
            pass
        _VMEM_LIMIT_CACHE = int(
            max(32 * 1024 * 1024, min(cap - 16 * 1024 * 1024, 112 * 1024 * 1024)))
    return _VMEM_LIMIT_CACHE


# --------------------------------------------------------------------------
# Fused multi-step rollout kernel
# --------------------------------------------------------------------------

def _rollout_kernel(tp_ref, spikes_ref, v_ref, *, kc, tail):
    """One (rows, N) tile x one chunk of `kc` (or `tail`) simulation steps.

    tp_ref:     (rows, N) f32      -- spike period 1/(input+1e-15)
    spikes_ref: (kc, rows, N) int8 -- spike plane for every step in this chunk
    v_ref:      (rows, N) f32      -- membrane state; resident across the chunk
                                      axis (same output block for every chunk)
    """
    c = pl.program_id(1)

    # Fused state init: zero v on the first step chunk (no HBM zeros tensor).
    @pl.when(c == 0)
    def _():
        v_ref[...] = jnp.zeros_like(v_ref)

    tp = tp_ref[...]
    thr_hi = tp + jnp.float32(PULSE_WIDTH)     # hoisted: identical every step

    def step(k, v):
        v = v + jnp.float32(DT)                                  # v += dt
        spikes_ref[k] = (v > tp).astype(spikes_ref.dtype)        # pre-clamp threshold
        return jnp.where(v > thr_hi, jnp.float32(PULSE_WIDTH), v)

    def run(n):
        # v (plus tp / thr_hi) stays in vregs across the whole chunk; only the
        # int8 spike plane is stored each step.  Fully unroll short chunks,
        # partial unroll=8 for long ones (avoids the rolled-loop penalty).
        v_ref[...] = lax.fori_loop(0, n, step, v_ref[...],
                                   unroll=True if n <= 32 else 8)

    if tail == kc:                     # every chunk is full (static decision)
        run(kc)
    else:                              # ragged last chunk
        @pl.when(c < pl.num_programs(1) - 1)
        def _():
            run(kc)

        @pl.when(c == pl.num_programs(1) - 1)
        def _():
            run(tail)


def _pick_block_rows(M, N):
    """Rows per tile such that v, t_period, thr_hi (3 f32 planes) fit in vregs."""
    rows = (128 * 1024) // (3 * 4 * max(N, 1))   # 3*rows*N*4 <= ~128 KiB (~32 vregs)
    rows = max(8, (rows // 8) * 8)
    rows = min(rows, 512)
    return M if rows >= M else rows


def _pick_step_chunk(N, rows, num_steps):
    """Steps per chunk so the pipelined VMEM footprint stays <= _VMEM_BUDGET."""
    rows_pad = -(-rows // 32) * 32          # int8 planes pad to 32-sublane tiles
    fixed = 2 * rows * N * 4 * 2            # double-buffered t_period in + v out
    per_step = 2 * rows_pad * N             # double-buffered int8 spike plane/step
    kc = max(_VMEM_BUDGET - fixed, per_step) // per_step
    return int(max(1, min(_KC_DEFAULT, num_steps, kc)))


@functools.partial(jax.jit, static_argnames=("num_steps", "step_chunk"))
def input_group_rollout(t_period, *, num_steps, step_chunk=None):
    """Run `num_steps` InputGroup steps (from v = 0) in one pallas_call.

    t_period: (M, N) float32.
    Returns (spikes, v): spikes (num_steps, M, N) int8, v (M, N) float32.
    """
    M, N = t_period.shape
    rows = _pick_block_rows(M, N)
    if step_chunk is None:
        kc = _pick_step_chunk(N, rows, num_steps)
    else:
        kc = int(max(1, min(step_chunk, num_steps)))
    num_chunks = pl.cdiv(num_steps, kc)
    tail = num_steps - (num_chunks - 1) * kc

    grid = (pl.cdiv(M, rows), num_chunks)          # step-chunk axis last
    state_spec = pl.BlockSpec((rows, N), lambda i, c: (i, 0))
    spike_spec = pl.BlockSpec((kc, rows, N), lambda i, c: (c, i, 0))

    kernel = functools.partial(_rollout_kernel, kc=kc, tail=tail)

    return pl.pallas_call(
        kernel,
        out_shape=(jax.ShapeDtypeStruct((num_steps, M, N), jnp.int8),  # spikes
                   jax.ShapeDtypeStruct((M, N), jnp.float32)),         # final v
        grid=grid,
        in_specs=[state_spec],
        out_specs=(spike_spec, state_spec),        # v block resident across chunks
        compiler_params=pltpu.CompilerParams(
            dimension_semantics=("parallel", "arbitrary"),
            vmem_limit_bytes=_vmem_limit_bytes()),
    )(t_period)


# --------------------------------------------------------------------------
# Single-step kernel (PyTorch-style per-step forward() path)
# --------------------------------------------------------------------------

def _step_kernel(v_ref, tp_ref, spikes_ref, v_out_ref):
    tp = tp_ref[...]
    v = v_ref[...] + jnp.float32(DT)
    spikes_ref[...] = (v > tp).astype(spikes_ref.dtype)
    v_out_ref[...] = jnp.where(v > tp + jnp.float32(PULSE_WIDTH),
                               jnp.float32(PULSE_WIDTH), v)


def _pick_step_rows(M, N):
    rows = (4 * 1024 * 1024) // (13 * max(N, 1))   # v, tp, v_out f32 + int8 spikes
    rows = max(8, (rows // 8) * 8)
    return M if rows >= M else rows


@functools.partial(jax.jit, donate_argnums=(0,))
def input_group_step(v, t_period):
    """One InputGroup step. v is updated in place in HBM (aliased + donated)."""
    M, N = v.shape
    rows = _pick_step_rows(M, N)
    spec = pl.BlockSpec((rows, N), lambda i: (i, 0))
    return pl.pallas_call(
        _step_kernel,
        out_shape=(jax.ShapeDtypeStruct((M, N), jnp.int8),
                   jax.ShapeDtypeStruct((M, N), jnp.float32)),
        grid=(pl.cdiv(M, rows),),
        in_specs=[spec, spec],
        out_specs=(spec, spec),
        input_output_aliases={0: 1},
        compiler_params=pltpu.CompilerParams(
            dimension_semantics=("parallel",),
            vmem_limit_bytes=_vmem_limit_bytes()),
    )(v, t_period)


# --------------------------------------------------------------------------
# Module wrapper
# --------------------------------------------------------------------------

class InputGroup:
    """JAX/Pallas port of the PyTorch InputGroup module (forward only)."""

    def __init__(self, dt=DT, Tsim=TSIM, record=False):
        self.dt = dt
        self.Tsim = Tsim
        self.pulse_width = PULSE_WIDTH
        self.record = record
        if self.record:
            self.v_t = []
            self.s_t = []

    def _init_state(self, x):
        self.batch_size = x.shape[0]
        self._shape = x.shape
        xf = x.reshape(x.shape[0], -1).astype(jnp.float32)   # lane-dense flatten
        self._M, self._N = xf.shape
        self.t_period = 1.0 / (xf + 1e-15)
        self.v = jnp.zeros((self._M, self._N), jnp.float32)
        self.spikes = jnp.zeros((self._M, self._N), jnp.int8)

    def forward(self, x, num_steps):
        """One step, mirroring the PyTorch call (num_steps == step index)."""
        if num_steps == 0:
            self._init_state(x)
        self.spikes, self.v = input_group_step(self.v, self.t_period)
        if self.record:
            self.v_t.append(self.v.reshape(self._shape))
            self.s_t.append(self.spikes.reshape(self._shape))
        return self.spikes.reshape(self._shape), self.v.reshape(self._shape)

    def run(self, x, n_steps, step_chunk=None):
        """Fused rollout: n_steps of forward() (starting from step 0) in one
        pallas_call with step-chunked tiling and in-kernel v init."""
        self.batch_size = x.shape[0]
        self._shape = x.shape
        xf = x.reshape(x.shape[0], -1).astype(jnp.float32)
        self._M, self._N = xf.shape
        self.t_period = 1.0 / (xf + 1e-15)
        spikes_all, self.v = input_group_rollout(
            self.t_period, num_steps=n_steps, step_chunk=step_chunk)
        self.spikes = spikes_all[-1]
        if self.record:
            for k in range(n_steps):
                self.s_t.append(spikes_all[k].reshape(self._shape))
            self.v_t.append(self.v.reshape(self._shape))
        return (spikes_all.reshape((n_steps,) + self._shape),
                self.v.reshape(self._shape))


# --------------------------------------------------------------------------
# Demo / correctness check
# --------------------------------------------------------------------------

if __name__ == "__main__":
    key = jax.random.PRNGKey(0)
    B, C, H, W = 2, 4, 16, 16
    # Input "currents" sized so t_period = 1/(x + 1e-15) lies in [5e-6, 1e-4] s,
    # i.e. spikes appear within a handful of dt = 1e-6 steps.
    x = jax.random.uniform(key, (B, C, H, W), jnp.float32,
                           minval=1.0e4, maxval=2.0e5)

    xf = x.reshape(B, -1)
    tp_ref = 1.0 / (xf + 1e-15)

    def ref_step(v):
        v = v + DT
        s = (v > tp_ref).astype(jnp.int8)
        v = jnp.where(v > tp_ref + PULSE_WIDTH, jnp.float32(PULSE_WIDTH), v)
        return s, v

    total_steps = 20
    v_r = jnp.zeros_like(xf)
    s_refs, v_refs = [], []
    for _ in range(total_steps):
        s_r, v_r = ref_step(v_r)
        s_refs.append(s_r)
        v_refs.append(v_r)

    # 1) Fused rollout, single step chunk (n_steps = 8 <= KC).
    layer = InputGroup()
    spikes8, v8 = layer.run(x, 8)
    jax.block_until_ready((spikes8, v8))
    for k in range(8):
        assert jnp.array_equal(spikes8[k].reshape(B, -1), s_refs[k]), \
            f"rollout spike mismatch at step {k}"
    assert jnp.array_equal(v8.reshape(B, -1), v_refs[7]), "rollout v mismatch"

    # 2) Fused rollout with a forced small step chunk (chunks of 8 + 8 + 4):
    #    exercises the chunked grid, the resident v across chunks (pl.when init)
    #    and the ragged tail chunk.
    layer2 = InputGroup()
    spikes20, v20 = layer2.run(x, total_steps, step_chunk=8)
    jax.block_until_ready((spikes20, v20))
    for k in range(total_steps):
        assert jnp.array_equal(spikes20[k].reshape(B, -1), s_refs[k]), \
            f"chunked rollout spike mismatch at step {k}"
    assert jnp.array_equal(v20.reshape(B, -1), v_refs[-1]), "chunked rollout v mismatch"

    # 3) PyTorch-style per-step stepping API.
    layer3 = InputGroup()
    s_k = v_k = None
    for k in range(8):
        s_k, v_k = layer3.forward(x, k)
        assert jnp.array_equal(s_k.reshape(B, -1), s_refs[k]), \
            f"per-step spike mismatch at step {k}"
        assert jnp.array_equal(v_k.reshape(B, -1), v_refs[k]), \
            f"per-step v mismatch at step {k}"
    jax.block_until_ready((s_k, v_k))

    print("KERNEL_OK")
</pallas_src>

<mosaic_0001>
module attributes {stable_mosaic.version = 11 : i64} {
  func.func @_rollout_kernel(%arg0: i32, %arg1: i32, %arg2: memref<2x1024xf32, #tpu.memory_space<vmem>>, %arg3: memref<8x2x1024xi8, #tpu.memory_space<vmem>>, %arg4: memref<2x1024xf32, #tpu.memory_space<vmem>>) attributes {dimension_semantics = [#tpu.dimension_semantics<parallel>, #tpu.dimension_semantics<arbitrary>], iteration_bounds = array<i64: 1, 1>, scalar_prefetch = 0 : i64, scratch_operands = 0 : i64, tpu.core_type = #tpu.core_type<tc>, window_params = [{transform_indices = @transform_0, window_bounds = array<i64: 2, 1024>}, {transform_indices = @transform_1, window_bounds = array<i64: 8, 2, 1024>}, {transform_indices = @transform_2, window_bounds = array<i64: 2, 1024>}]} {
    %c0_i32 = arith.constant 0 : i32
    %0 = arith.cmpi eq, %arg1, %c0_i32 : i32
    %1 = arith.extui %0 : i1 to i32
    %c0_i32_0 = arith.constant 0 : i32
    %2 = arith.cmpi ne, %1, %c0_i32_0 : i32
    scf.if %2 {
      %cst_39 = arith.constant 0.000000e+00 : f32
      %96 = vector.broadcast %cst_39 : f32 to vector<2x1024xf32>
      %c0_40 = arith.constant 0 : index
      %c0_41 = arith.constant 0 : index
      %97 = vector.load %arg4[%c0_40, %c0_41] : memref<2x1024xf32, #tpu.memory_space<vmem>>, vector<2x1024xf32>
      tpu.vector_store %arg4[%c0_40, %c0_41], %96 {strides = array<i32>} : memref<2x1024xf32, #tpu.memory_space<vmem>>, vector<2x1024xf32>,
    } else {
    }
    %c0 = arith.constant 0 : index
    %c0_1 = arith.constant 0 : index
    %3 = vector.load %arg2[%c0, %c0_1] : memref<2x1024xf32, #tpu.memory_space<vmem>>, vector<2x1024xf32>
    %cst = arith.constant 4.500000e-05 : f32
    %4 = vector.broadcast %cst : f32 to vector<2x1024xf32>
    %5 = arith.addf %3, %4 : vector<2x1024xf32>
    %c0_2 = arith.constant 0 : index
    %c0_3 = arith.constant 0 : index
    %6 = vector.load %arg4[%c0_2, %c0_3] : memref<2x1024xf32, #tpu.memory_space<vmem>>, vector<2x1024xf32>
    %c0_i32_4 = arith.constant 0 : i32
    %cst_5 = arith.constant 9.99999997E-7 : f32
    %7 = vector.broadcast %cst_5 : f32 to vector<2x1024xf32>
    %8 = arith.addf %6, %7 : vector<2x1024xf32>
    %9 = arith.cmpf ogt, %8, %3 : vector<2x1024xf32>
    %10 = arith.extui %9 : vector<2x1024xi1> to vector<2x1024xi8>
    %11 = arith.index_cast %c0_i32_4 : i32 to index
    %c0_6 = arith.constant 0 : index
    %c0_7 = arith.constant 0 : index
    %12 = vector.load %arg3[%11, %c0_6, %c0_7] : memref<8x2x1024xi8, #tpu.memory_space<vmem>>, vector<1x2x1024xi8>
    %13 = vector.shape_cast %12 : vector<1x2x1024xi8> to vector<2x1024xi8>
    %14 = vector.shape_cast %10 : vector<2x1024xi8> to vector<1x2x1024xi8>
    tpu.vector_store %arg3[%11, %c0_6, %c0_7], %14 {strides = array<i32>} : memref<8x2x1024xi8, #tpu.memory_space<vmem>>, vector<1x2x1024xi8>,
    %15 = arith.cmpf ogt, %8, %5 : vector<2x1024xf32>
    %cst_8 = arith.constant 4.500000e-05 : f32
    %16 = vector.broadcast %cst_8 : f32 to vector<2x1024xf32>
    %17 = arith.select %15, %16, %8 : vector<2x1024xi1>, vector<2x1024xf32>
    %c1_i32 = arith.constant 1 : i32
    %cst_9 = arith.constant 9.99999997E-7 : f32
    %18 = vector.broadcast %cst_9 : f32 to vector<2x1024xf32>
    %19 = arith.addf %17, %18 : vector<2x1024xf32>
    %20 = arith.cmpf ogt, %19, %3 : vector<2x1024xf32>
    %21 = arith.extui %20 : vector<2x1024xi1> to vector<2x1024xi8>
    %22 = arith.index_cast %c1_i32 : i32 to index
    %c0_10 = arith.constant 0 : index
    %c0_11 = arith.constant 0 : index
    %23 = vector.load %arg3[%22, %c0_10, %c0_11] : memref<8x2x1024xi8, #tpu.memory_space<vmem>>, vector<1x2x1024xi8>
    %24 = vector.shape_cast %23 : vector<1x2x1024xi8> to vector<2x1024xi8>
    %25 = vector.shape_cast %21 : vector<2x1024xi8> to vector<1x2x1024xi8>
    tpu.vector_store %arg3[%22, %c0_10, %c0_11], %25 {strides = array<i32>} : memref<8x2x1024xi8, #tpu.memory_space<vmem>>, vector<1x2x1024xi8>,
    %26 = arith.cmpf ogt, %19, %5 : vector<2x1024xf32>
    %cst_12 = arith.constant 4.500000e-05 : f32
    %27 = vector.broadcast %cst_12 : f32 to vector<2x1024xf32>
    %28 = arith.select %26, %27, %19 : vector<2x1024xi1>, vector<2x1024xf32>
    %c2_i32 = arith.constant 2 : i32
    %cst_13 = arith.constant 9.99999997E-7 : f32
    %29 = vector.broadcast %cst_13 : f32 to vector<2x1024xf32>
    %30 = arith.addf %28, %29 : vector<2x1024xf32>
    %31 = arith.cmpf ogt, %30, %3 : vector<2x1024xf32>
    %32 = arith.extui %31 : vector<2x1024xi1> to vector<2x1024xi8>
    %33 = arith.index_cast %c2_i32 : i32 to index
    %c0_14 = arith.constant 0 : index
    %c0_15 = arith.constant 0 : index
    %34 = vector.load %arg3[%33, %c0_14, %c0_15] : memref<8x2x1024xi8, #tpu.memory_space<vmem>>, vector<1x2x1024xi8>
    %35 = vector.shape_cast %34 : vector<1x2x1024xi8> to vector<2x1024xi8>
    %36 = vector.shape_cast %32 : vector<2x1024xi8> to vector<1x2x1024xi8>
    tpu.vector_store %arg3[%33, %c0_14, %c0_15], %36 {strides = array<i32>} : memref<8x2x1024xi8, #tpu.memory_space<vmem>>, vector<1x2x1024xi8>,
    %37 = arith.cmpf ogt, %30, %5 : vector<2x1024xf32>
    %cst_16 = arith.constant 4.500000e-05 : f32
    %38 = vector.broadcast %cst_16 : f32 to vector<2x1024xf32>
    %39 = arith.select %37, %38, %30 : vector<2x1024xi1>, vector<2x1024xf32>
    %c3_i32 = arith.constant 3 : i32
    %cst_17 = arith.constant 9.99999997E-7 : f32
    %40 = vector.broadcast %cst_17 : f32 to vector<2x1024xf32>
    %41 = arith.addf %39, %40 : vector<2x1024xf32>
    %42 = arith.cmpf ogt, %41, %3 : vector<2x1024xf32>
    %43 = arith.extui %42 : vector<2x1024xi1> to vector<2x1024xi8>
    %44 = arith.index_cast %c3_i32 : i32 to index
    %c0_18 = arith.constant 0 : index
    %c0_19 = arith.constant 0 : index
    %45 = vector.load %arg3[%44, %c0_18, %c0_19] : memref<8x2x1024xi8, #tpu.memory_space<vmem>>, vector<1x2x1024xi8>
    %46 = vector.shape_cast %45 : vector<1x2x1024xi8> to vector<2x1024xi8>
    %47 = vector.shape_cast %43 : vector<2x1024xi8> to vector<1x2x1024xi8>
    tpu.vector_store %arg3[%44, %c0_18, %c0_19], %47 {strides = array<i32>} : memref<8x2x1024xi8, #tpu.memory_space<vmem>>, vector<1x2x1024xi8>,
    %48 = arith.cmpf ogt, %41, %5 : vector<2x1024xf32>
    %cst_20 = arith.constant 4.500000e-05 : f32
    %49 = vector.broadcast %cst_20 : f32 to vector<2x1024xf32>
    %50 = arith.select %48, %49, %41 : vector<2x1024xi1>, vector<2x1024xf32>
    %c4_i32 = arith.constant 4 : i32
    %cst_21 = arith.constant 9.99999997E-7 : f32
    %51 = vector.broadcast %cst_21 : f32 to vector<2x1024xf32>
    %52 = arith.addf %50, %51 : vector<2x1024xf32>
    %53 = arith.cmpf ogt, %52, %3 : vector<2x1024xf32>
    %54 = arith.extui %53 : vector<2x1024xi1> to vector<2x1024xi8>
    %55 = arith.index_cast %c4_i32 : i32 to index
    %c0_22 = arith.constant 0 : index
    %c0_23 = arith.constant 0 : index
    %56 = vector.load %arg3[%55, %c0_22, %c0_23] : memref<8x2x1024xi8, #tpu.memory_space<vmem>>, vector<1x2x1024xi8>
    %57 = vector.shape_cast %56 : vector<1x2x1024xi8> to vector<2x1024xi8>
    %58 = vector.shape_cast %54 : vector<2x1024xi8> to vector<1x2x1024xi8>
    tpu.vector_store %arg3[%55, %c0_22, %c0_23], %58 {strides = array<i32>} : memref<8x2x1024xi8, #tpu.memory_space<vmem>>, vector<1x2x1024xi8>,
    %59 = arith.cmpf ogt, %52, %5 : vector<2x1024xf32>
    %cst_24 = arith.constant 4.500000e-05 : f32
    %60 = vector.broadcast %cst_24 : f32 to vector<2x1024xf32>
    %61 = arith.select %59, %60, %52 : vector<2x1024xi1>, vector<2x1024xf32>
    %c5_i32 = arith.constant 5 : i32
    %cst_25 = arith.constant 9.99999997E-7 : f32
    %62 = vector.broadcast %cst_25 : f32 to vector<2x1024xf32>
    %63 = arith.addf %61, %62 : vector<2x1024xf32>
    %64 = arith.cmpf ogt, %63, %3 : vector<2x1024xf32>
    %65 = arith.extui %64 : vector<2x1024xi1> to vector<2x1024xi8>
    %66 = arith.index_cast %c5_i32 : i32 to index
    %c0_26 = arith.constant 0 : index
    %c0_27 = arith.constant 0 : index
    %67 = vector.load %arg3[%66, %c0_26, %c0_27] : memref<8x2x1024xi8, #tpu.memory_space<vmem>>, vector<1x2x1024xi8>
    %68 = vector.shape_cast %67 : vector<1x2x1024xi8> to vector<2x1024xi8>
    %69 = vector.shape_cast %65 : vector<2x1024xi8> to vector<1x2x1024xi8>
    tpu.vector_store %arg3[%66, %c0_26, %c0_27], %69 {strides = array<i32>} : memref<8x2x1024xi8, #tpu.memory_space<vmem>>, vector<1x2x1024xi8>,
    %70 = arith.cmpf ogt, %63, %5 : vector<2x1024xf32>
    %cst_28 = arith.constant 4.500000e-05 : f32
    %71 = vector.broadcast %cst_28 : f32 to vector<2x1024xf32>
    %72 = arith.select %70, %71, %63 : vector<2x1024xi1>, vector<2x1024xf32>
    %c6_i32 = arith.constant 6 : i32
    %cst_29 = arith.constant 9.99999997E-7 : f32
    %73 = vector.broadcast %cst_29 : f32 to vector<2x1024xf32>
    %74 = arith.addf %72, %73 : vector<2x1024xf32>
    %75 = arith.cmpf ogt, %74, %3 : vector<2x1024xf32>
    %76 = arith.extui %75 : vector<2x1024xi1> to vector<2x1024xi8>
    %77 = arith.index_cast %c6_i32 : i32 to index
    %c0_30 = arith.constant 0 : index
    %c0_31 = arith.constant 0 : index
    %78 = vector.load %arg3[%77, %c0_30, %c0_31] : memref<8x2x1024xi8, #tpu.memory_space<vmem>>, vector<1x2x1024xi8>
    %79 = vector.shape_cast %78 : vector<1x2x1024xi8> to vector<2x1024xi8>
    %80 = vector.shape_cast %76 : vector<2x1024xi8> to vector<1x2x1024xi8>
    tpu.vector_store %arg3[%77, %c0_30, %c0_31], %80 {strides = array<i32>} : memref<8x2x1024xi8, #tpu.memory_space<vmem>>, vector<1x2x1024xi8>,
    %81 = arith.cmpf ogt, %74, %5 : vector<2x1024xf32>
    %cst_32 = arith.constant 4.500000e-05 : f32
    %82 = vector.broadcast %cst_32 : f32 to vector<2x1024xf32>
    %83 = arith.select %81, %82, %74 : vector<2x1024xi1>, vector<2x1024xf32>
    %c7_i32 = arith.constant 7 : i32
    %cst_33 = arith.constant 9.99999997E-7 : f32
    %84 = vector.broadcast %cst_33 : f32 to vector<2x1024xf32>
    %85 = arith.addf %83, %84 : vector<2x1024xf32>
    %86 = arith.cmpf ogt, %85, %3 : vector<2x1024xf32>
    %87 = arith.extui %86 : vector<2x1024xi1> to vector<2x1024xi8>
    %88 = arith.index_cast %c7_i32 : i32 to index
    %c0_34 = arith.constant 0 : index
    %c0_35 = arith.constant 0 : index
    %89 = vector.load %arg3[%88, %c0_34, %c0_35] : memref<8x2x1024xi8, #tpu.memory_space<vmem>>, vector<1x2x1024xi8>
    %90 = vector.shape_cast %89 : vector<1x2x1024xi8> to vector<2x1024xi8>
    %91 = vector.shape_cast %87 : vector<2x1024xi8> to vector<1x2x1024xi8>
    tpu.vector_store %arg3[%88, %c0_34, %c0_35], %91 {strides = array<i32>} : memref<8x2x1024xi8, #tpu.memory_space<vmem>>, vector<1x2x1024xi8>,
    %92 = arith.cmpf ogt, %85, %5 : vector<2x1024xf32>
    %cst_36 = arith.constant 4.500000e-05 : f32
    %93 = vector.broadcast %cst_36 : f32 to vector<2x1024xf32>
    %94 = arith.select %92, %93, %85 : vector<2x1024xi1>, vector<2x1024xf32>
    %c8_i32 = arith.constant 8 : i32
    %c0_37 = arith.constant 0 : index
    %c0_38 = arith.constant 0 : index
    %95 = vector.load %arg4[%c0_37, %c0_38] : memref<2x1024xf32, #tpu.memory_space<vmem>>, vector<2x1024xf32>
    tpu.vector_store %arg4[%c0_37, %c0_38], %94 {strides = array<i32>} : memref<2x1024xf32, #tpu.memory_space<vmem>>, vector<2x1024xf32>,
    return
  }
  func.func @transform_0(%arg0: i32, %arg1: i32) -> (i32, i32) {
    %c0_i32 = arith.constant 0 : i32
    %c0_i32_0 = arith.constant 0 : i32
    return %arg0, %c0_i32 : i32, i32
  }
  func.func @transform_1(%arg0: i32, %arg1: i32) -> (i32, i32, i32) {
    %c0_i32 = arith.constant 0 : i32
    %c0_i32_0 = arith.constant 0 : i32
    return %arg1, %arg0, %c0_i32 : i32, i32, i32
  }
  func.func @transform_2(%arg0: i32, %arg1: i32) -> (i32, i32) {
    %c0_i32 = arith.constant 0 : i32
    %c0_i32_0 = arith.constant 0 : i32
    return %arg0, %c0_i32 : i32, i32
  }
}

</mosaic_0001>

<llo_original>
// kernel: input_group_rollout.1
$region0: #{input_group_rollout.1}
  #allocation0 [shape = 'u32[]', space=smem, size = 0x4, offset = 0x4, fixed_abs, tag = 'smem constant byte address 0x4 - core index']
  #allocation1 [shape = 'u32[144,128]{1,0:T(1,128)}', space=vmem, size = 0x12000, scoped, tag = 'internal scratch']
  %s0 = inlined_call_operand.hbm [shape: f32[2,1024], index: 0, kind: input, shape index: {}]
  %s1 = inlined_call_operand.vmem [shape: s8[8,2,1024], index: 1, kind: output, shape index: {0}]
  %s2 = inlined_call_operand.hbm [shape: f32[2,1024], index: 2, kind: output, shape index: {1}]
  %3 = xla_tuple %s1, %s2
  %s4 = sld [smem:[#allocation0]]
  $region30: #{input_group_rollout.1} parent=0
    _
  %s6 = ssub.s32 1, %s4
  %s7 = scalar_select 0, %s6, %s4
  $region1: #{input_group_rollout.1} parent=0
    #allocation2 [shape = 'u8[8192]{0}', space=vmem, size = 0x2000, scoped, tag = 'input window, operand 0, single buffered']
    #allocation3 [shape = 's32[1]{0}', space=sflag, size = 0x4, scoped, tag = 'scoped memory for input_group_rollout.1']
    #allocation4 [shape = 's32[1]{0}', space=sflag, size = 0x4, scoped, tag = 'scoped memory for input_group_rollout.1']
    #allocation5 [shape = 'u8[8192]{0}', space=vmem, size = 0x2000, scoped, tag = 'output window, operand 1, single buffered']
    %8 = vsyncpa [#allocation3], 0
    %9 = vsyncpa [#allocation4], 0
    // Predicated region
    $region2: #{input_group_rollout.1} parent=1 // pred_check
      _
    $region3: #{input_group_rollout.1} parent=1 // pred_check_branch
      %11 = sbr.rel (0) target = $region5
    $region4: #{input_group_rollout.1} parent=1 // pred_region
      %s13 = ssub.s32 256, 256
      %14 = vsyncadd [#allocation3], %s13
      %s16 = sshll.u32 [#allocation2], 4
      %s17 = int_to_ptr.vmem [resolvable:$true] %s16
      %19 = dma.hbm_to_vmem [thread:$0]  %s0, 256, %s17, [#allocation3]
    $region5: #{input_group_rollout.1} parent=1 // pred_fallthru
      _
    // Predicated region
    $region6: #{input_group_rollout.1} parent=1 // pred_check
      _
    $region7: #{input_group_rollout.1} parent=1 // pred_check_branch
      %21 = sbr.rel (0) target = $region9
    $region8: #{input_group_rollout.1} parent=1 // pred_region
      %22 = dma.done [#allocation3], 256
    $region9: #{input_group_rollout.1} parent=1 // pred_fallthru
      _
    %p25 = scmp.eq.s32.totalorder 0, 0
    // Predicated region
    $region10: #{input_group_rollout.1} parent=1 // pred_check
      %p26 = pneg %p25
    $region11: #{input_group_rollout.1} parent=1 // pred_check_branch
      %28 = sbr.rel (%p26) target = $region13
    $region12: #{input_group_rollout.1} parent=1 // pred_region
      %29 = vst [vmem:[#allocation5] sm:$0xff] 0.0
      %30 = vst [vmem:[#allocation5 + $0x8] sm:$0xff] 0.0
    $region13: #{input_group_rollout.1} parent=1 // pred_fallthru
      _
    %v31 = vld [vmem:[#allocation2] sm:$0xff]
    %v32 = vld [vmem:[#allocation2 + $0x8] sm:$0xff]
    %v33 = vadd.f32 %v31, 4.5e-05
    %v34 = vadd.f32 %v32, 4.5e-05
    %v35 = vld [vmem:[#allocation5] sm:$0xff]
    %v36 = vld [vmem:[#allocation5 + $0x8] sm:$0xff]
    %v37 = vadd.f32 %v35, 1e-06
    %v38 = vadd.f32 %v36, 1e-06
    %vm39 = vcmp.gt.f32.partialorder %v37, %v31
    %vm40 = vcmp.gt.f32.partialorder %v38, %v32
    %v41 = vsel %vm39, 1, 0
    %v42 = vsel %vm40, 1, 0
    %v43 = vcombine.high %v41, %v41
    %v45 = vunpack.c.l.s4 1983009808
    %v46 = vunpack.c.0.s8 %v45
    %v47 = vlaneseq
    %v48 = vshrl.u32 %v47, 7
    %v49 = vsub.s32 %v46, %v48
    %v50 = vrot.slane %v41, %v49
    %v52 = vunpack.c.l.s4 1983009808
    %v53 = vunpack.c.0.s8 %v52
    %v54 = vlaneseq
    %v55 = vshrl.u32 %v54, 7
    %v56 = vsub.s32 %v53, %v55
    %v57 = vrot.slane %v43, %v56
    %v58 = vcombine.high %v42, %v42
    %v60 = vunpack.c.l.s4 1983009808
    %v61 = vunpack.c.0.s8 %v60
    %v62 = vlaneseq
    %v63 = vshrl.u32 %v62, 7
    %v64 = vsub.s32 %v61, %v63
    %v65 = vrot.slane %v42, %v64
    %v67 = vunpack.c.l.s4 1983009808
    %v68 = vunpack.c.0.s8 %v67
    %v69 = vlaneseq
    %v70 = vshrl.u32 %v69, 7
    %v71 = vsub.s32 %v68, %v70
    %v72 = vrot.slane %v58, %v71
    %vm73 = vcmp.ne.s32.totalorder %v50, 0
    %vm74 = vcmp.ne.s32.totalorder %v57, 0
    %vm75 = vcmp.ne.s32.totalorder %v65, 0
    %vm76 = vcmp.ne.s32.totalorder %v72, 0
    %v77 = vsel %vm73, 1, 0
    %v78 = vsel %vm74, 1, 0
    %v79 = vsel %vm75, 1, 0
    %v80 = vsel %vm76, 1, 0
    %v81 = vpack.c.b16 %v78, %v77
    %v82 = vpack.c.b16 %v80, %v79
    %v83 = vpack.c.b8 %v82, %v81
    %vm84 = vnez %v83
    %v85 = vsel %vm84, 16843009, 0
    %v86 = vcombine.high %v85, %v85
    %v88 = vunpack.c.l.s4 1966171168
    %v89 = vunpack.c.0.s8 %v88
    %v90 = vlaneseq
    %v91 = vshrl.u32 %v90, 7
    %v92 = vsub.s32 %v89, %v91
    %v93 = vrot.slane %v85, %v92
    %v95 = vunpack.c.l.s4 1966171168
    %v96 = vunpack.c.0.s8 %v95
    %v97 = vlaneseq
    %v98 = vshrl.u32 %v97, 7
    %v99 = vsub.s32 %v96, %v98
    %v100 = vrot.slane %v86, %v99
    %v101 = vcombine.high %v93, %v93
    %v102 = vcombine.high %v100, %v100
    %v104 = vunpack.c.l.s4 1966171168
    %v105 = vunpack.c.0.s8 %v104
    %v106 = vlaneseq
    %v107 = vshrl.u32 %v106, 7
    %v108 = vsub.s32 %v105, %v107
    %v109 = vrot.slane %v93, %v108
    %v111 = vunpack.c.l.s4 1966171168
    %v112 = vunpack.c.0.s8 %v111
    %v113 = vlaneseq
    %v114 = vshrl.u32 %v113, 7
    %v115 = vsub.s32 %v112, %v114
    %v116 = vrot.slane %v100, %v115
    %v118 = vunpack.c.l.s4 1966171168
    %v119 = vunpack.c.0.s8 %v118
    %v120 = vlaneseq
    %v121 = vshrl.u32 %v120, 7
    %v122 = vsub.s32 %v119, %v121
    %v123 = vrot.slane %v101, %v122
    %v125 = vunpack.c.l.s4 1966171168
    %v126 = vunpack.c.0.s8 %v125
    %v127 = vlaneseq
    %v128 = vshrl.u32 %v127, 7
    %v129 = vsub.s32 %v126, %v128
    %v130 = vrot.slane %v102, %v129
    %v131 = vcombine.high %v109, %v109
    %v132 = vcombine.high %v116, %v116
    %v133 = vcombine.high %v123, %v123
    %v134 = vcombine.high %v130, %v130
    %vm135 = vnez %v109
    %vm136 = vnez %v123
    %vm137 = vnez %v131
    %vm138 = vnez %v133
    %vm139 = vnez %v116
    %vm140 = vnez %v130
    %vm141 = vnez %v132
    %vm142 = vnez %v134
    %v143 = vsel %vm135, 16843009, 0
    %v144 = vsel %vm136, 16843009, 0
    %v145 = vsel %vm137, 16843009, 0
    %v146 = vsel %vm138, 16843009, 0
    %v147 = vsel %vm139, 16843009, 0
    %v148 = vsel %vm140, 16843009, 0
    %v149 = vsel %vm141, 16843009, 0
    %v150 = vsel %vm142, 16843009, 0
    %v151 = vcombine.low %v143, %v144
    %v152 = vcombine.low %v145, %v146
    %v153 = vcombine.low %v147, %v148
    %v154 = vcombine.low %v149, %v150
    %v156 = vunpack.c.l.s4 1966171168
    %v157 = vunpack.c.0.s8 %v156
    %v158 = vlaneseq
    %v159 = vshrl.u32 %v158, 7
    %v160 = vsub.s32 %v157, %v159
    %v161 = vrot.slane %v151, %v160
    %v163 = vunpack.c.l.s4 1966171168
    %v164 = vunpack.c.0.s8 %v163
    %v165 = vlaneseq
    %v166 = vshrl.u32 %v165, 7
    %v167 = vsub.s32 %v164, %v166
    %v168 = vrot.slane %v152, %v167
    %v170 = vunpack.c.l.s4 1966171168
    %v171 = vunpack.c.0.s8 %v170
    %v172 = vlaneseq
    %v173 = vshrl.u32 %v172, 7
    %v174 = vsub.s32 %v171, %v173
    %v175 = vrot.slane %v153, %v174
    %v177 = vunpack.c.l.s4 1966171168
    %v178 = vunpack.c.0.s8 %v177
    %v179 = vlaneseq
    %v180 = vshrl.u32 %v179, 7
    %v181 = vsub.s32 %v178, %v180
    %v182 = vrot.slane %v154, %v181
    %v183 = vcombine.low %v161, %v168
    %v184 = vcombine.low %v175, %v182
    %v186 = vunpack.c.l.s4 1966171168
    %v187 = vunpack.c.0.s8 %v186
    %v188 = vlaneseq
    %v189 = vshrl.u32 %v188, 7
    %v190 = vsub.s32 %v187, %v189
    %v191 = vrot.slane %v183, %v190
    %v193 = vunpack.c.l.s4 1966171168
    %v194 = vunpack.c.0.s8 %v193
    %v195 = vlaneseq
    %v196 = vshrl.u32 %v195, 7
    %v197 = vsub.s32 %v194, %v196
    %v198 = vrot.slane %v184, %v197
    %v199 = vcombine.low %v191, %v198
    %vm200 = vcmask 1040384
    %vm201 = vsmask.f32 256
    %vm202 = vmand %vm200, %vm201
    %vm203 = vcmask 1041409
    %vm204 = vsmask.f32 1280
    %vm205 = vmand %vm203, %vm204
    %vm206 = vmor %vm205, %vm202
    %vm207 = vcmask 1042434
    %vm208 = vsmask.f32 2304
    %vm209 = vmand %vm207, %vm208
    %vm210 = vmor %vm209, %vm206
    %vm211 = vcmask 1043459
    %vm212 = vsmask.f32 3328
    %vm213 = vmand %vm211, %vm212
    %vm214 = vmor %vm213, %vm210
    %vm215 = vcmask 1044484
    %vm216 = vsmask.f32 4352
    %vm217 = vmand %vm215, %vm216
    %vm218 = vmor %vm217, %vm214
    %vm219 = vcmask 1045509
    %vm220 = vsmask.f32 5376
    %vm221 = vmand %vm219, %vm220
    %vm222 = vmor %vm221, %vm218
    %vm223 = vcmask 1046534
    %vm224 = vsmask.f32 6400
    %vm225 = vmand %vm223, %vm224
    %vm226 = vmor %vm225, %vm222
    %vm227 = vcmask 1047559
    %vm228 = vsmask.f32 7424
    %vm229 = vmand %vm227, %vm228
    %vm230 = vmor %vm229, %vm226
    %v231 = vld [vmem:[%s1] sm:$0xff]
    %v232 = vsel %vm230, %v199, %v231
    %233 = vst [vmem:[%s1] sm:$0xff] %v232
    %vm234 = vcmp.gt.f32.partialorder %v37, %v33
    %vm235 = vcmp.gt.f32.partialorder %v38, %v34
    %v236 = vsel %vm234, 4.5e-05, %v37
    %v237 = vsel %vm235, 4.5e-05, %v38
    %v238 = vadd.f32 %v236, 1e-06
    %v239 = vadd.f32 %v237, 1e-06
    %vm240 = vcmp.gt.f32.partialorder %v238, %v31
    %vm241 = vcmp.gt.f32.partialorder %v239, %v32
    %v242 = vsel %vm240, 1, 0
    %v243 = vsel %vm241, 1, 0
    %v244 = vcombine.high %v242, %v242
    %v246 = vunpack.c.l.s4 1983009808
    %v247 = vunpack.c.0.s8 %v246
    %v248 = vlaneseq
    %v249 = vshrl.u32 %v248, 7
    %v250 = vsub.s32 %v247, %v249
    %v251 = vrot.slane %v242, %v250
    %v253 = vunpack.c.l.s4 1983009808
    %v254 = vunpack.c.0.s8 %v253
    %v255 = vlaneseq
    %v256 = vshrl.u32 %v255, 7
    %v257 = vsub.s32 %v254, %v256
    %v258 = vrot.slane %v244, %v257
    %v259 = vcombine.high %v243, %v243
    %v261 = vunpack.c.l.s4 1983009808
    %v262 = vunpack.c.0.s8 %v261
    %v263 = vlaneseq
    %v264 = vshrl.u32 %v263, 7
    %v265 = vsub.s32 %v262, %v264
    %v266 = vrot.slane %v243, %v265
    %v268 = vunpack.c.l.s4 1983009808
    %v269 = vunpack.c.0.s8 %v268
    %v270 = vlaneseq
    %v271 = vshrl.u32 %v270, 7
    %v272 = vsub.s32 %v269, %v271
    %v273 = vrot.slane %v259, %v272
    %vm274 = vcmp.ne.s32.totalorder %v251, 0
    %vm275 = vcmp.ne.s32.totalorder %v258, 0
    %vm276 = vcmp.ne.s32.totalorder %v266, 0
    %vm277 = vcmp.ne.s32.totalorder %v273, 0
    %v278 = vsel %vm274, 1, 0
    %v279 = vsel %vm275, 1, 0
    %v280 = vsel %vm276, 1, 0
    %v281 = vsel %vm277, 1, 0
    %v282 = vpack.c.b16 %v279, %v278
    %v283 = vpack.c.b16 %v281, %v280
    %v284 = vpack.c.b8 %v283, %v282
    %vm285 = vnez %v284
    %v286 = vsel %vm285, 16843009, 0
    %v287 = vcombine.high %v286, %v286
    %v289 = vunpack.c.l.s4 1966171168
    %v290 = vunpack.c.0.s8 %v289
    %v291 = vlaneseq
    %v292 = vshrl.u32 %v291, 7
    %v293 = vsub.s32 %v290, %v292
    %v294 = vrot.slane %v286, %v293
    %v296 = vunpack.c.l.s4 1966171168
    %v297 = vunpack.c.0.s8 %v296
    %v298 = vlaneseq
    %v299 = vshrl.u32 %v298, 7
    %v300 = vsub.s32 %v297, %v299
    %v301 = vrot.slane %v287, %v300
    %v302 = vcombine.high %v294, %v294
    %v303 = vcombine.high %v301, %v301
    %v305 = vunpack.c.l.s4 1966171168
    %v306 = vunpack.c.0.s8 %v305
    %v307 = vlaneseq
    %v308 = vshrl.u32 %v307, 7
    %v309 = vsub.s32 %v306, %v308
    %v310 = vrot.slane %v294, %v309
    %v312 = vunpack.c.l.s4 1966171168
    %v313 = vunpack.c.0.s8 %v312
    %v314 = vlaneseq
    %v315 = vshrl.u32 %v314, 7
    %v316 = vsub.s32 %v313, %v315
    %v317 = vrot.slane %v301, %v316
    %v319 = vunpack.c.l.s4 1966171168
    %v320 = vunpack.c.0.s8 %v319
    %v321 = vlaneseq
    %v322 = vshrl.u32 %v321, 7
    %v323 = vsub.s32 %v320, %v322
    %v324 = vrot.slane %v302, %v323
    %v326 = vunpack.c.l.s4 1966171168
    %v327 = vunpack.c.0.s8 %v326
    %v328 = vlaneseq
    %v329 = vshrl.u32 %v328, 7
    %v330 = vsub.s32 %v327, %v329
    %v331 = vrot.slane %v303, %v330
    %v332 = vcombine.high %v310, %v310
    %v333 = vcombine.high %v317, %v317
    %v334 = vcombine.high %v324, %v324
    %v335 = vcombine.high %v331, %v331
    %vm336 = vnez %v310
    %vm337 = vnez %v324
    %vm338 = vnez %v332
    %vm339 = vnez %v334
    %vm340 = vnez %v317
    %vm341 = vnez %v331
    %vm342 = vnez %v333
    %vm343 = vnez %v335
    %v344 = vsel %vm336, 16843009, 0
    %v345 = vsel %vm337, 16843009, 0
    %v346 = vsel %vm338, 16843009, 0
    %v347 = vsel %vm339, 16843009, 0
    %v348 = vsel %vm340, 16843009, 0
    %v349 = vsel %vm341, 16843009, 0
    %v350 = vsel %vm342, 16843009, 0
    %v351 = vsel %vm343, 16843009, 0
    %v352 = vcombine.low %v344, %v345
    %v353 = vcombine.low %v346, %v347
    %v354 = vcombine.low %v348, %v349
    %v355 = vcombine.low %v350, %v351
    %v357 = vunpack.c.l.s4 1966171168
    %v358 = vunpack.c.0.s8 %v357
    %v359 = vlaneseq
    %v360 = vshrl.u32 %v359, 7
    %v361 = vsub.s32 %v358, %v360
    %v362 = vrot.slane %v352, %v361
    %v364 = vunpack.c.l.s4 1966171168
    %v365 = vunpack.c.0.s8 %v364
    %v366 = vlaneseq
    %v367 = vshrl.u32 %v366, 7
    %v368 = vsub.s32 %v365, %v367
    %v369 = vrot.slane %v353, %v368
    %v371 = vunpack.c.l.s4 1966171168
    %v372 = vunpack.c.0.s8 %v371
    %v373 = vlaneseq
    %v374 = vshrl.u32 %v373, 7
    %v375 = vsub.s32 %v372, %v374
    %v376 = vrot.slane %v354, %v375
    %v378 = vunpack.c.l.s4 1966171168
    %v379 = vunpack.c.0.s8 %v378
    %v380 = vlaneseq
    %v381 = vshrl.u32 %v380, 7
    %v382 = vsub.s32 %v379, %v381
    %v383 = vrot.slane %v355, %v382
    %v384 = vcombine.low %v362, %v369
    %v385 = vcombine.low %v376, %v383
    %v387 = vunpack.c.l.s4 1966171168
    %v388 = vunpack.c.0.s8 %v387
    %v389 = vlaneseq
    %v390 = vshrl.u32 %v389, 7
    %v391 = vsub.s32 %v388, %v390
    %v392 = vrot.slane %v384, %v391
    %v394 = vunpack.c.l.s4 1966171168
    %v395 = vunpack.c.0.s8 %v394
    %v396 = vlaneseq
    %v397 = vshrl.u32 %v396, 7
    %v398 = vsub.s32 %v395, %v397
    %v399 = vrot.slane %v385, %v398
    %v400 = vcombine.low %v392, %v399
    %s401 = scalar_lea.vmem %s1, 8
    %v402 = vld [vmem:[%s401] sm:$0xff]
    %v403 = vsel %vm230, %v400, %v402
    %404 = vst [vmem:[%s401] sm:$0xff] %v403
    %vm405 = vcmp.gt.f32.partialorder %v238, %v33
    %vm406 = vcmp.gt.f32.partialorder %v239, %v34
    %v407 = vsel %vm405, 4.5e-05, %v238
    %v408 = vsel %vm406, 4.5e-05, %v239
    %v409 = vadd.f32 %v407, 1e-06
    %v410 = vadd.f32 %v408, 1e-06
    %vm411 = vcmp.gt.f32.partialorder %v409, %v31
    %vm412 = vcmp.gt.f32.partialorder %v410, %v32
    %v413 = vsel %vm411, 1, 0
    %v414 = vsel %vm412, 1, 0
    %v415 = vcombine.high %v413, %v413
    %v417 = vunpack.c.l.s4 1983009808
    %v418 = vunpack.c.0.s8 %v417
    %v419 = vlaneseq
    %v420 = vshrl.u32 %v419, 7
    %v421 = vsub.s32 %v418, %v420
    %v422 = vrot.slane %v413, %v421
    %v424 = vunpack.c.l.s4 1983009808
    %v425 = vunpack.c.0.s8 %v424
    %v426 = vlaneseq
    %v427 = vshrl.u32 %v426, 7
    %v428 = vsub.s32 %v425, %v427
    %v429 = vrot.slane %v415, %v428
    %v430 = vcombine.high %v414, %v414
    %v432 = vunpack.c.l.s4 1983009808
    %v433 = vunpack.c.0.s8 %v432
    %v434 = vlaneseq
    %v435 = vshrl.u32 %v434, 7
    %v436 = vsub.s32 %v433, %v435
    %v437 = vrot.slane %v414, %v436
    %v439 = vunpack.c.l.s4 1983009808
    %v440 = vunpack.c.0.s8 %v439
    %v441 = vlaneseq
    %v442 = vshrl.u32 %v441, 7
    %v443 = vsub.s32 %v440, %v442
    %v444 = vrot.slane %v430, %v443
    %vm445 = vcmp.ne.s32.totalorder %v422, 0
    %vm446 = vcmp.ne.s32.totalorder %v429, 0
    %vm447 = vcmp.ne.s32.totalorder %v437, 0
    %vm448 = vcmp.ne.s32.totalorder %v444, 0
    %v449 = vsel %vm445, 1, 0
    %v450 = vsel %vm446, 1, 0
    %v451 = vsel %vm447, 1, 0
    %v452 = vsel %vm448, 1, 0
    %v453 = vpack.c.b16 %v450, %v449
    %v454 = vpack.c.b16 %v452, %v451
    %v455 = vpack.c.b8 %v454, %v453
    %vm456 = vnez %v455
    %v457 = vsel %vm456, 16843009, 0
    %v458 = vcombine.high %v457, %v457
    %v460 = vunpack.c.l.s4 1966171168
    %v461 = vunpack.c.0.s8 %v460
    %v462 = vlaneseq
    %v463 = vshrl.u32 %v462, 7
    %v464 = vsub.s32 %v461, %v463
    %v465 = vrot.slane %v457, %v464
    %v467 = vunpack.c.l.s4 1966171168
    %v468 = vunpack.c.0.s8 %v467
    %v469 = vlaneseq
    %v470 = vshrl.u32 %v469, 7
    %v471 = vsub.s32 %v468, %v470
    %v472 = vrot.slane %v458, %v471
    %v473 = vcombine.high %v465, %v465
    %v474 = vcombine.high %v472, %v472
    %v476 = vunpack.c.l.s4 1966171168
    %v477 = vunpack.c.0.s8 %v476
    %v478 = vlaneseq
    %v479 = vshrl.u32 %v478, 7
    %v480 = vsub.s32 %v477, %v479
    %v481 = vrot.slane %v465, %v480
    %v483 = vunpack.c.l.s4 1966171168
    %v484 = vunpack.c.0.s8 %v483
    %v485 = vlaneseq
    %v486 = vshrl.u32 %v485, 7
    %v487 = vsub.s32 %v484, %v486
    %v488 = vrot.slane %v472, %v487
    %v490 = vunpack.c.l.s4 1966171168
    %v491 = vunpack.c.0.s8 %v490
    %v492 = vlaneseq
    %v493 = vshrl.u32 %v492, 7
    %v494 = vsub.s32 %v491, %v493
    %v495 = vrot.slane %v473, %v494
    %v497 = vunpack.c.l.s4 1966171168
    %v498 = vunpack.c.0.s8 %v497
    %v499 = vlaneseq
    %v500 = vshrl.u32 %v499, 7
    %v501 = vsub.s32 %v498, %v500
    %v502 = vrot.slane %v474, %v501
    %v503 = vcombine.high %v481, %v481
    %v504 = vcombine.high %v488, %v488
    %v505 = vcombine.high %v495, %v495
    %v506 = vcombine.high %v502, %v502
    %vm507 = vnez %v481
    %vm508 = vnez %v495
    %vm509 = vnez %v503
    %vm510 = vnez %v505
    %vm511 = vnez %v488
    %vm512 = vnez %v502
    %vm513 = vnez %v504
    %vm514 = vnez %v506
    %v515 = vsel %vm507, 16843009, 0
    %v516 = vsel %vm508, 16843009, 0
    %v517 = vsel %vm509, 16843009, 0
    %v518 = vsel %vm510, 16843009, 0
    %v519 = vsel %vm511, 16843009, 0
    %v520 = vsel %vm512, 16843009, 0
    %v521 = vsel %vm513, 16843009, 0
    %v522 = vsel %vm514, 16843009, 0
    %v523 = vcombine.low %v515, %v516
    %v524 = vcombine.low %v517, %v518
    %v525 = vcombine.low %v519, %v520
    %v526 = vcombine.low %v521, %v522
    %v528 = vunpack.c.l.s4 1966171168
    %v529 = vunpack.c.0.s8 %v528
    %v530 = vlaneseq
    %v531 = vshrl.u32 %v530, 7
    %v532 = vsub.s32 %v529, %v531
    %v533 = vrot.slane %v523, %v532
    %v535 = vunpack.c.l.s4 1966171168
    %v536 = vunpack.c.0.s8 %v535
    %v537 = vlaneseq
    %v538 = vshrl.u32 %v537, 7
    %v539 = vsub.s32 %v536, %v538
    %v540 = vrot.slane %v524, %v539
    %v542 = vunpack.c.l.s4 1966171168
    %v543 = vunpack.c.0.s8 %v542
    %v544 = vlaneseq
    %v545 = vshrl.u32 %v544, 7
    %v546 = vsub.s32 %v543, %v545
    %v547 = vrot.slane %v525, %v546
    %v549 = vunpack.c.l.s4 1966171168
    %v550 = vunpack.c.0.s8 %v549
    %v551 = vlaneseq
    %v552 = vshrl.u32 %v551, 7
    %v553 = vsub.s32 %v550, %v552
    %v554 = vrot.slane %v526, %v553
    %v555 = vcombine.low %v533, %v540
    %v556 = vcombine.low %v547, %v554
    %v558 = vunpack.c.l.s4 1966171168
    %v559 = vunpack.c.0.s8 %v558
    %v560 = vlaneseq
    %v561 = vshrl.u32 %v560, 7
    %v562 = vsub.s32 %v559, %v561
    %v563 = vrot.slane %v555, %v562
    %v565 = vunpack.c.l.s4 1966171168
    %v566 = vunpack.c.0.s8 %v565
    %v567 = vlaneseq
    %v568 = vshrl.u32 %v567, 7
    %v569 = vsub.s32 %v566, %v568
    %v570 = vrot.slane %v556, %v569
    %v571 = vcombine.low %v563, %v570
    %s572 = scalar_lea.vmem %s1, 16
    %v573 = vld [vmem:[%s572] sm:$0xff]
    %v574 = vsel %vm230, %v571, %v573
    %575 = vst [vmem:[%s572] sm:$0xff] %v574
    %vm576 = vcmp.gt.f32.partialorder %v409, %v33
    %vm577 = vcmp.gt.f32.partialorder %v410, %v34
    %v578 = vsel %vm576, 4.5e-05, %v409
    %v579 = vsel %vm577, 4.5e-05, %v410
    %v580 = vadd.f32 %v578, 1e-06
    %v581 = vadd.f32 %v579, 1e-06
    %vm582 = vcmp.gt.f32.partialorder %v580, %v31
    %vm583 = vcmp.gt.f32.partialorder %v581, %v32
    %v584 = vsel %vm582, 1, 0
    %v585 = vsel %vm583, 1, 0
    %v586 = vcombine.high %v584, %v584
    %v588 = vunpack.c.l.s4 1983009808
    %v589 = vunpack.c.0.s8 %v588
    %v590 = vlaneseq
    %v591 = vshrl.u32 %v590, 7
    %v592 = vsub.s32 %v589, %v591
    %v593 = vrot.slane %v584, %v592
    %v595 = vunpack.c.l.s4 1983009808
    %v596 = vunpack.c.0.s8 %v595
    %v597 = vlaneseq
    %v598 = vshrl.u32 %v597, 7
    %v599 = vsub.s32 %v596, %v598
    %v600 = vrot.slane %v586, %v599
    %v601 = vcombine.high %v585, %v585
    %v603 = vunpack.c.l.s4 1983009808
    %v604 = vunpack.c.0.s8 %v603
    %v605 = vlaneseq
    %v606 = vshrl.u32 %v605, 7
    %v607 = vsub.s32 %v604, %v606
    %v608 = vrot.slane %v585, %v607
    %v610 = vunpack.c.l.s4 1983009808
    %v611 = vunpack.c.0.s8 %v610
    %v612 = vlaneseq
    %v613 = vshrl.u32 %v612, 7
    %v614 = vsub.s32 %v611, %v613
    %v615 = vrot.slane %v601, %v614
    %vm616 = vcmp.ne.s32.totalorder %v593, 0
    %vm617 = vcmp.ne.s32.totalorder %v600, 0
    %vm618 = vcmp.ne.s32.totalorder %v608, 0
    %vm619 = vcmp.ne.s32.totalorder %v615, 0
    %v620 = vsel %vm616, 1, 0
    %v621 = vsel %vm617, 1, 0
    %v622 = vsel %vm618, 1, 0
    %v623 = vsel %vm619, 1, 0
    %v624 = vpack.c.b16 %v621, %v620
    %v625 = vpack.c.b16 %v623, %v622
    %v626 = vpack.c.b8 %v625, %v624
    %vm627 = vnez %v626
    %v628 = vsel %vm627, 16843009, 0
    %v629 = vcombine.high %v628, %v628
    %v631 = vunpack.c.l.s4 1966171168
    %v632 = vunpack.c.0.s8 %v631
    %v633 = vlaneseq
    %v634 = vshrl.u32 %v633, 7
    %v635 = vsub.s32 %v632, %v634
    %v636 = vrot.slane %v628, %v635
    %v638 = vunpack.c.l.s4 1966171168
    %v639 = vunpack.c.0.s8 %v638
    %v640 = vlaneseq
    %v641 = vshrl.u32 %v640, 7
    %v642 = vsub.s32 %v639, %v641
    %v643 = vrot.slane %v629, %v642
    %v644 = vcombine.high %v636, %v636
    %v645 = vcombine.high %v643, %v643
    %v647 = vunpack.c.l.s4 1966171168
    %v648 = vunpack.c.0.s8 %v647
    %v649 = vlaneseq
    %v650 = vshrl.u32 %v649, 7
    %v651 = vsub.s32 %v648, %v650
    %v652 = vrot.slane %v636, %v651
    %v654 = vunpack.c.l.s4 1966171168
    %v655 = vunpack.c.0.s8 %v654
    %v656 = vlaneseq
    %v657 = vshrl.u32 %v656, 7
    %v658 = vsub.s32 %v655, %v657
    %v659 = vrot.slane %v643, %v658
    %v661 = vunpack.c.l.s4 1966171168
    %v662 = vunpack.c.0.s8 %v661
    %v663 = vlaneseq
    %v664 = vshrl.u32 %v663, 7
    %v665 = vsub.s32 %v662, %v664
    %v666 = vrot.slane %v644, %v665
    %v668 = vunpack.c.l.s4 1966171168
    %v669 = vunpack.c.0.s8 %v668
    %v670 = vlaneseq
    %v671 = vshrl.u32 %v670, 7
    %v672 = vsub.s32 %v669, %v671
    %v673 = vrot.slane %v645, %v672
    %v674 = vcombine.high %v652, %v652
    %v675 = vcombine.high %v659, %v659
    %v676 = vcombine.high %v666, %v666
    %v677 = vcombine.high %v673, %v673
    %vm678 = vnez %v652
    %vm679 = vnez %v666
    %vm680 = vnez %v674
    %vm681 = vnez %v676
    %vm682 = vnez %v659
    %vm683 = vnez %v673
    %vm684 = vnez %v675
    %vm685 = vnez %v677
    %v686 = vsel %vm678, 16843009, 0
    %v687 = vsel %vm679, 16843009, 0
    %v688 = vsel %vm680, 16843009, 0
    %v689 = vsel %vm681, 16843009, 0
    %v690 = vsel %vm682, 16843009, 0
    %v691 = vsel %vm683, 16843009, 0
    %v692 = vsel %vm684, 16843009, 0
    %v693 = vsel %vm685, 16843009, 0
    %v694 = vcombine.low %v686, %v687
    %v695 = vcombine.low %v688, %v689
    %v696 = vcombine.low %v690, %v691
    %v697 = vcombine.low %v692, %v693
    %v699 = vunpack.c.l.s4 1966171168
    %v700 = vunpack.c.0.s8 %v699
    %v701 = vlaneseq
    %v702 = vshrl.u32 %v701, 7
    %v703 = vsub.s32 %v700, %v702
    %v704 = vrot.slane %v694, %v703
    %v706 = vunpack.c.l.s4 1966171168
    %v707 = vunpack.c.0.s8 %v706
    %v708 = vlaneseq
    %v709 = vshrl.u32 %v708, 7
    %v710 = vsub.s32 %v707, %v709
    %v711 = vrot.slane %v695, %v710
    %v713 = vunpack.c.l.s4 1966171168
    %v714 = vunpack.c.0.s8 %v713
    %v715 = vlaneseq
    %v716 = vshrl.u32 %v715, 7
    %v717 = vsub.s32 %v714, %v716
    %v718 = vrot.slane %v696, %v717
    %v720 = vunpack.c.l.s4 1966171168
    %v721 = vunpack.c.0.s8 %v720
    %v722 = vlaneseq
    %v723 = vshrl.u32 %v722, 7
    %v724 = vsub.s32 %v721, %v723
    %v725 = vrot.slane %v697, %v724
    %v726 = vcombine.low %v704, %v711
    %v727 = vcombine.low %v718, %v725
    %v729 = vunpack.c.l.s4 1966171168
    %v730 = vunpack.c.0.s8 %v729
    %v731 = vlaneseq
    %v732 = vshrl.u32 %v731, 7
    %v733 = vsub.s32 %v730, %v732
    %v734 = vrot.slane %v726, %v733
    %v736 = vunpack.c.l.s4 1966171168
    %v737 = vunpack.c.0.s8 %v736
    %v738 = vlaneseq
    %v739 = vshrl.u32 %v738, 7
    %v740 = vsub.s32 %v737, %v739
    %v741 = vrot.slane %v727, %v740
    %v742 = vcombine.low %v734, %v741
    %s743 = scalar_lea.vmem %s1, 24
    %v744 = vld [vmem:[%s743] sm:$0xff]
    %v745 = vsel %vm230, %v742, %v744
    %746 = vst [vmem:[%s743] sm:$0xff] %v745
    %vm747 = vcmp.gt.f32.partialorder %v580, %v33
    %vm748 = vcmp.gt.f32.partialorder %v581, %v34
    %v749 = vsel %vm747, 4.5e-05, %v580
    %v750 = vsel %vm748, 4.5e-05, %v581
    %v751 = vadd.f32 %v749, 1e-06
    %v752 = vadd.f32 %v750, 1e-06
    %vm753 = vcmp.gt.f32.partialorder %v751, %v31
    %vm754 = vcmp.gt.f32.partialorder %v752, %v32
    %v755 = vsel %vm753, 1, 0
    %v756 = vsel %vm754, 1, 0
    %v757 = vcombine.high %v755, %v755
    %v759 = vunpack.c.l.s4 1983009808
    %v760 = vunpack.c.0.s8 %v759
    %v761 = vlaneseq
    %v762 = vshrl.u32 %v761, 7
    %v763 = vsub.s32 %v760, %v762
    %v764 = vrot.slane %v755, %v763
    %v766 = vunpack.c.l.s4 1983009808
    %v767 = vunpack.c.0.s8 %v766
    %v768 = vlaneseq
    %v769 = vshrl.u32 %v768, 7
    %v770 = vsub.s32 %v767, %v769
    %v771 = vrot.slane %v757, %v770
    %v772 = vcombine.high %v756, %v756
    %v774 = vunpack.c.l.s4 1983009808
    %v775 = vunpack.c.0.s8 %v774
    %v776 = vlaneseq
    %v777 = vshrl.u32 %v776, 7
    %v778 = vsub.s32 %v775, %v777
    %v779 = vrot.slane %v756, %v778
    %v781 = vunpack.c.l.s4 1983009808
    %v782 = vunpack.c.0.s8 %v781
    %v783 = vlaneseq
    %v784 = vshrl.u32 %v783, 7
    %v785 = vsub.s32 %v782, %v784
    %v786 = vrot.slane %v772, %v785
    %vm787 = vcmp.ne.s32.totalorder %v764, 0
    %vm788 = vcmp.ne.s32.totalorder %v771, 0
    %vm789 = vcmp.ne.s32.totalorder %v779, 0
    %vm790 = vcmp.ne.s32.totalorder %v786, 0
    %v791 = vsel %vm787, 1, 0
    %v792 = vsel %vm788, 1, 0
    %v793 = vsel %vm789, 1, 0
    %v794 = vsel %vm790, 1, 0
    %v795 = vpack.c.b16 %v792, %v791
    %v796 = vpack.c.b16 %v794, %v793
    %v797 = vpack.c.b8 %v796, %v795
    %vm798 = vnez %v797
    %v799 = vsel %vm798, 16843009, 0
    %v800 = vcombine.high %v799, %v799
    %v802 = vunpack.c.l.s4 1966171168
    %v803 = vunpack.c.0.s8 %v802
    %v804 = vlaneseq
    %v805 = vshrl.u32 %v804, 7
    %v806 = vsub.s32 %v803, %v805
    %v807 = vrot.slane %v799, %v806
    %v809 = vunpack.c.l.s4 1966171168
    %v810 = vunpack.c.0.s8 %v809
    %v811 = vlaneseq
    %v812 = vshrl.u32 %v811, 7
    %v813 = vsub.s32 %v810, %v812
    %v814 = vrot.slane %v800, %v813
    %v815 = vcombine.high %v807, %v807
    %v816 = vcombine.high %v814, %v814
    %v818 = vunpack.c.l.s4 1966171168
    %v819 = vunpack.c.0.s8 %v818
    %v820 = vlaneseq
    %v821 = vshrl.u32 %v820, 7
    %v822 = vsub.s32 %v819, %v821
    %v823 = vrot.slane %v807, %v822
    %v825 = vunpack.c.l.s4 1966171168
    %v826 = vunpack.c.0.s8 %v825
    %v827 = vlaneseq
    %v828 = vshrl.u32 %v827, 7
    %v829 = vsub.s32 %v826, %v828
    %v830 = vrot.slane %v814, %v829
    %v832 = vunpack.c.l.s4 1966171168
    %v833 = vunpack.c.0.s8 %v832
    %v834 = vlaneseq
    %v835 = vshrl.u32 %v834, 7
    %v836 = vsub.s32 %v833, %v835
    %v837 = vrot.slane %v815, %v836
    %v839 = vunpack.c.l.s4 1966171168
    %v840 = vunpack.c.0.s8 %v839
    %v841 = vlaneseq
    %v842 = vshrl.u32 %v841, 7
    %v843 = vsub.s32 %v840, %v842
    %v844 = vrot.slane %v816, %v843
    %v845 = vcombine.high %v823, %v823
    %v846 = vcombine.high %v830, %v830
    %v847 = vcombine.high %v837, %v837
    %v848 = vcombine.high %v844, %v844
    %vm849 = vnez %v823
    %vm850 = vnez %v837
    %vm851 = vnez %v845
    %vm852 = vnez %v847
    %vm853 = vnez %v830
    %vm854 = vnez %v844
    %vm855 = vnez %v846
    %vm856 = vnez %v848
    %v857 = vsel %vm849, 16843009, 0
    %v858 = vsel %vm850, 16843009, 0
    %v859 = vsel %vm851, 16843009, 0
    %v860 = vsel %vm852, 16843009, 0
    %v861 = vsel %vm853, 16843009, 0
    %v862 = vsel %vm854, 16843009, 0
    %v863 = vsel %vm855, 16843009, 0
    %v864 = vsel %vm856, 16843009, 0
    %v865 = vcombine.low %v857, %v858
    %v866 = vcombine.low %v859, %v860
    %v867 = vcombine.low %v861, %v862
    %v868 = vcombine.low %v863, %v864
    %v870 = vunpack.c.l.s4 1966171168
    %v871 = vunpack.c.0.s8 %v870
    %v872 = vlaneseq
    %v873 = vshrl.u32 %v872, 7
    %v874 = vsub.s32 %v871, %v873
    %v875 = vrot.slane %v865, %v874
    %v877 = vunpack.c.l.s4 1966171168
    %v878 = vunpack.c.0.s8 %v877
    %v879 = vlaneseq
    %v880 = vshrl.u32 %v879, 7
    %v881 = vsub.s32 %v878, %v880
    %v882 = vrot.slane %v866, %v881
    %v884 = vunpack.c.l.s4 1966171168
    %v885 = vunpack.c.0.s8 %v884
    %v886 = vlaneseq
    %v887 = vshrl.u32 %v886, 7
    %v888 = vsub.s32 %v885, %v887
    %v889 = vrot.slane %v867, %v888
    %v891 = vunpack.c.l.s4 1966171168
    %v892 = vunpack.c.0.s8 %v891
    %v893 = vlaneseq
    %v894 = vshrl.u32 %v893, 7
    %v895 = vsub.s32 %v892, %v894
    %v896 = vrot.slane %v868, %v895
    %v897 = vcombine.low %v875, %v882
    %v898 = vcombine.low %v889, %v896
    %v900 = vunpack.c.l.s4 1966171168
    %v901 = vunpack.c.0.s8 %v900
    %v902 = vlaneseq
    %v903 = vshrl.u32 %v902, 7
    %v904 = vsub.s32 %v901, %v903
    %v905 = vrot.slane %v897, %v904
    %v907 = vunpack.c.l.s4 1966171168
    %v908 = vunpack.c.0.s8 %v907
    %v909 = vlaneseq
    %v910 = vshrl.u32 %v909, 7
    %v911 = vsub.s32 %v908, %v910
    %v912 = vrot.slane %v898, %v911
    %v913 = vcombine.low %v905, %v912
    %s914 = scalar_lea.vmem %s1, 32
    %v915 = vld [vmem:[%s914] sm:$0xff]
    %v916 = vsel %vm230, %v913, %v915
    %917 = vst [vmem:[%s914] sm:$0xff] %v916
    %vm918 = vcmp.gt.f32.partialorder %v751, %v33
    %vm919 = vcmp.gt.f32.partialorder %v752, %v34
    %v920 = vsel %vm918, 4.5e-05, %v751
    %v921 = vsel %vm919, 4.5e-05, %v752
    %v922 = vadd.f32 %v920, 1e-06
    %v923 = vadd.f32 %v921, 1e-06
    %vm924 = vcmp.gt.f32.partialorder %v922, %v31
    %vm925 = vcmp.gt.f32.partialorder %v923, %v32
    %v926 = vsel %vm924, 1, 0
    %v927 = vsel %vm925, 1, 0
    %v928 = vcombine.high %v926, %v926
    %v930 = vunpack.c.l.s4 1983009808
    %v931 = vunpack.c.0.s8 %v930
    %v932 = vlaneseq
    %v933 = vshrl.u32 %v932, 7
    %v934 = vsub.s32 %v931, %v933
    %v935 = vrot.slane %v926, %v934
    %v937 = vunpack.c.l.s4 1983009808
    %v938 = vunpack.c.0.s8 %v937
    %v939 = vlaneseq
    %v940 = vshrl.u32 %v939, 7
    %v941 = vsub.s32 %v938, %v940
    %v942 = vrot.slane %v928, %v941
    %v943 = vcombine.high %v927, %v927
    %v945 = vunpack.c.l.s4 1983009808
    %v946 = vunpack.c.0.s8 %v945
    %v947 = vlaneseq
    %v948 = vshrl.u32 %v947, 7
    %v949 = vsub.s32 %v946, %v948
    %v950 = vrot.slane %v927, %v949
    %v952 = vunpack.c.l.s4 1983009808
    %v953 = vunpack.c.0.s8 %v952
    %v954 = vlaneseq
    %v955 = vshrl.u32 %v954, 7
    %v956 = vsub.s32 %v953, %v955
    %v957 = vrot.slane %v943, %v956
    %vm958 = vcmp.ne.s32.totalorder %v935, 0
    %vm959 = vcmp.ne.s32.totalorder %v942, 0
    %vm960 = vcmp.ne.s32.totalorder %v950, 0
    %vm961 = vcmp.ne.s32.totalorder %v957, 0
    %v962 = vsel %vm958, 1, 0
    %v963 = vsel %vm959, 1, 0
    %v964 = vsel %vm960, 1, 0
    %v965 = vsel %vm961, 1, 0
    %v966 = vpack.c.b16 %v963, %v962
    %v967 = vpack.c.b16 %v965, %v964
    %v968 = vpack.c.b8 %v967, %v966
    %vm969 = vnez %v968
    %v970 = vsel %vm969, 16843009, 0
    %v971 = vcombine.high %v970, %v970
    %v973 = vunpack.c.l.s4 1966171168
    %v974 = vunpack.c.0.s8 %v973
    %v975 = vlaneseq
    %v976 = vshrl.u32 %v975, 7
    %v977 = vsub.s32 %v974, %v976
    %v978 = vrot.slane %v970, %v977
    %v980 = vunpack.c.l.s4 1966171168
    %v981 = vunpack.c.0.s8 %v980
    %v982 = vlaneseq
    %v983 = vshrl.u32 %v982, 7
    %v984 = vsub.s32 %v981, %v983
    %v985 = vrot.slane %v971, %v984
    %v986 = vcombine.high %v978, %v978
    %v987 = vcombine.high %v985, %v985
    %v989 = vunpack.c.l.s4 1966171168
    %v990 = vunpack.c.0.s8 %v989
    %v991 = vlaneseq
    %v992 = vshrl.u32 %v991, 7
    %v993 = vsub.s32 %v990, %v992
    %v994 = vrot.slane %v978, %v993
    %v996 = vunpack.c.l.s4 1966171168
    %v997 = vunpack.c.0.s8 %v996
    %v998 = vlaneseq
    %v999 = vshrl.u32 %v998, 7
    %v1000 = vsub.s32 %v997, %v999
    %v1001 = vrot.slane %v985, %v1000
    %v1003 = vunpack.c.l.s4 1966171168
    %v1004 = vunpack.c.0.s8 %v1003
    %v1005 = vlaneseq
    %v1006 = vshrl.u32 %v1005, 7
    %v1007 = vsub.s32 %v1004, %v1006
    %v1008 = vrot.slane %v986, %v1007
    %v1010 = vunpack.c.l.s4 1966171168
    %v1011 = vunpack.c.0.s8 %v1010
    %v1012 = vlaneseq
    %v1013 = vshrl.u32 %v1012, 7
    %v1014 = vsub.s32 %v1011, %v1013
    %v1015 = vrot.slane %v987, %v1014
    %v1016 = vcombine.high %v994, %v994
    %v1017 = vcombine.high %v1001, %v1001
    %v1018 = vcombine.high %v1008, %v1008
    %v1019 = vcombine.high %v1015, %v1015
    %vm1020 = vnez %v994
    %vm1021 = vnez %v1008
    %vm1022 = vnez %v1016
    %vm1023 = vnez %v1018
    %vm1024 = vnez %v1001
    %vm1025 = vnez %v1015
    %vm1026 = vnez %v1017
    %vm1027 = vnez %v1019
    %v1028 = vsel %vm1020, 16843009, 0
    %v1029 = vsel %vm1021, 16843009, 0
    %v1030 = vsel %vm1022, 16843009, 0
    %v1031 = vsel %vm1023, 16843009, 0
    %v1032 = vsel %vm1024, 16843009, 0
    %v1033 = vsel %vm1025, 16843009, 0
    %v1034 = vsel %vm1026, 16843009, 0
    %v1035 = vsel %vm1027, 16843009, 0
    %v1036 = vcombine.low %v1028, %v1029
    %v1037 = vcombine.low %v1030, %v1031
    %v1038 = vcombine.low %v1032, %v1033
    %v1039 = vcombine.low %v1034, %v1035
    %v1041 = vunpack.c.l.s4 1966171168
    %v1042 = vunpack.c.0.s8 %v1041
    %v1043 = vlaneseq
    %v1044 = vshrl.u32 %v1043, 7
    %v1045 = vsub.s32 %v1042, %v1044
    %v1046 = vrot.slane %v1036, %v1045
    %v1048 = vunpack.c.l.s4 1966171168
    %v1049 = vunpack.c.0.s8 %v1048
    %v1050 = vlaneseq
    %v1051 = vshrl.u32 %v1050, 7
    %v1052 = vsub.s32 %v1049, %v1051
    %v1053 = vrot.slane %v1037, %v1052
    %v1055 = vunpack.c.l.s4 1966171168
    %v1056 = vunpack.c.0.s8 %v1055
    %v1057 = vlaneseq
    %v1058 = vshrl.u32 %v1057, 7
    %v1059 = vsub.s32 %v1056, %v1058
    %v1060 = vrot.slane %v1038, %v1059
    %v1062 = vunpack.c.l.s4 1966171168
    %v1063 = vunpack.c.0.s8 %v1062
    %v1064 = vlaneseq
    %v1065 = vshrl.u32 %v1064, 7
    %v1066 = vsub.s32 %v1063, %v1065
    %v1067 = vrot.slane %v1039, %v1066
    %v1068 = vcombine.low %v1046, %v1053
    %v1069 = vcombine.low %v1060, %v1067
    %v1071 = vunpack.c.l.s4 1966171168
    %v1072 = vunpack.c.0.s8 %v1071
    %v1073 = vlaneseq
    %v1074 = vshrl.u32 %v1073, 7
    %v1075 = vsub.s32 %v1072, %v1074
    %v1076 = vrot.slane %v1068, %v1075
    %v1078 = vunpack.c.l.s4 1966171168
    %v1079 = vunpack.c.0.s8 %v1078
    %v1080 = vlaneseq
    %v1081 = vshrl.u32 %v1080, 7
    %v1082 = vsub.s32 %v1079, %v1081
    %v1083 = vrot.slane %v1069, %v1082
    %v1084 = vcombine.low %v1076, %v1083
    %s1085 = scalar_lea.vmem %s1, 40
    %v1086 = vld [vmem:[%s1085] sm:$0xff]
    %v1087 = vsel %vm230, %v1084, %v1086
    %1088 = vst [vmem:[%s1085] sm:$0xff] %v1087
    %vm1089 = vcmp.gt.f32.partialorder %v922, %v33
    %vm1090 = vcmp.gt.f32.partialorder %v923, %v34
    %v1091 = vsel %vm1089, 4.5e-05, %v922
    %v1092 = vsel %vm1090, 4.5e-05, %v923
    %v1093 = vadd.f32 %v1091, 1e-06
    %v1094 = vadd.f32 %v1092, 1e-06
    %vm1095 = vcmp.gt.f32.partialorder %v1093, %v31
    %vm1096 = vcmp.gt.f32.partialorder %v1094, %v32
    %v1097 = vsel %vm1095, 1, 0
    %v1098 = vsel %vm1096, 1, 0
    %v1099 = vcombine.high %v1097, %v1097
    %v1101 = vunpack.c.l.s4 1983009808
    %v1102 = vunpack.c.0.s8 %v1101
    %v1103 = vlaneseq
    %v1104 = vshrl.u32 %v1103, 7
    %v1105 = vsub.s32 %v1102, %v1104
    %v1106 = vrot.slane %v1097, %v1105
    %v1108 = vunpack.c.l.s4 1983009808
    %v1109 = vunpack.c.0.s8 %v1108
    %v1110 = vlaneseq
    %v1111 = vshrl.u32 %v1110, 7
    %v1112 = vsub.s32 %v1109, %v1111
    %v1113 = vrot.slane %v1099, %v1112
    %v1114 = vcombine.high %v1098, %v1098
    %v1116 = vunpack.c.l.s4 1983009808
    %v1117 = vunpack.c.0.s8 %v1116
    %v1118 = vlaneseq
    %v1119 = vshrl.u32 %v1118, 7
    %v1120 = vsub.s32 %v1117, %v1119
    %v1121 = vrot.slane %v1098, %v1120
    %v1123 = vunpack.c.l.s4 1983009808
    %v1124 = vunpack.c.0.s8 %v1123
    %v1125 = vlaneseq
    %v1126 = vshrl.u32 %v1125, 7
    %v1127 = vsub.s32 %v1124, %v1126
    %v1128 = vrot.slane %v1114, %v1127
    %vm1129 = vcmp.ne.s32.totalorder %v1106, 0
    %vm1130 = vcmp.ne.s32.totalorder %v1113, 0
    %vm1131 = vcmp.ne.s32.totalorder %v1121, 0
    %vm1132 = vcmp.ne.s32.totalorder %v1128, 0
    %v1133 = vsel %vm1129, 1, 0
    %v1134 = vsel %vm1130, 1, 0
    %v1135 = vsel %vm1131, 1, 0
    %v1136 = vsel %vm1132, 1, 0
    %v1137 = vpack.c.b16 %v1134, %v1133
    %v1138 = vpack.c.b16 %v1136, %v1135
    %v1139 = vpack.c.b8 %v1138, %v1137
    %vm1140 = vnez %v1139
    %v1141 = vsel %vm1140, 16843009, 0
    %v1142 = vcombine.high %v1141, %v1141
    %v1144 = vunpack.c.l.s4 1966171168
    %v1145 = vunpack.c.0.s8 %v1144
    %v1146 = vlaneseq
    %v1147 = vshrl.u32 %v1146, 7
    %v1148 = vsub.s32 %v1145, %v1147
    %v1149 = vrot.slane %v1141, %v1148
    %v1151 = vunpack.c.l.s4 1966171168
    %v1152 = vunpack.c.0.s8 %v1151
    %v1153 = vlaneseq
    %v1154 = vshrl.u32 %v1153, 7
    %v1155 = vsub.s32 %v1152, %v1154
    %v1156 = vrot.slane %v1142, %v1155
    %v1157 = vcombine.high %v1149, %v1149
    %v1158 = vcombine.high %v1156, %v1156
    %v1160 = vunpack.c.l.s4 1966171168
    %v1161 = vunpack.c.0.s8 %v1160
    %v1162 = vlaneseq
    %v1163 = vshrl.u32 %v1162, 7
    %v1164 = vsub.s32 %v1161, %v1163
    %v1165 = vrot.slane %v1149, %v1164
    %v1167 = vunpack.c.l.s4 1966171168
    %v1168 = vunpack.c.0.s8 %v1167
    %v1169 = vlaneseq
    %v1170 = vshrl.u32 %v1169, 7
    %v1171 = vsub.s32 %v1168, %v1170
    %v1172 = vrot.slane %v1156, %v1171
    %v1174 = vunpack.c.l.s4 1966171168
    %v1175 = vunpack.c.0.s8 %v1174
    %v1176 = vlaneseq
    %v1177 = vshrl.u32 %v1176, 7
    %v1178 = vsub.s32 %v1175, %v1177
    %v1179 = vrot.slane %v1157, %v1178
    %v1181 = vunpack.c.l.s4 1966171168
    %v1182 = vunpack.c.0.s8 %v1181
    %v1183 = vlaneseq
    %v1184 = vshrl.u32 %v1183, 7
    %v1185 = vsub.s32 %v1182, %v1184
    %v1186 = vrot.slane %v1158, %v1185
    %v1187 = vcombine.high %v1165, %v1165
    %v1188 = vcombine.high %v1172, %v1172
    %v1189 = vcombine.high %v1179, %v1179
    %v1190 = vcombine.high %v1186, %v1186
    %vm1191 = vnez %v1165
    %vm1192 = vnez %v1179
    %vm1193 = vnez %v1187
    %vm1194 = vnez %v1189
    %vm1195 = vnez %v1172
    %vm1196 = vnez %v1186
    %vm1197 = vnez %v1188
    %vm1198 = vnez %v1190
    %v1199 = vsel %vm1191, 16843009, 0
    %v1200 = vsel %vm1192, 16843009, 0
    %v1201 = vsel %vm1193, 16843009, 0
    %v1202 = vsel %vm1194, 16843009, 0
    %v1203 = vsel %vm1195, 16843009, 0
    %v1204 = vsel %vm1196, 16843009, 0
    %v1205 = vsel %vm1197, 16843009, 0
    %v1206 = vsel %vm1198, 16843009, 0
    %v1207 = vcombine.low %v1199, %v1200
    %v1208 = vcombine.low %v1201, %v1202
    %v1209 = vcombine.low %v1203, %v1204
    %v1210 = vcombine.low %v1205, %v1206
    %v1212 = vunpack.c.l.s4 1966171168
    %v1213 = vunpack.c.0.s8 %v1212
    %v1214 = vlaneseq
    %v1215 = vshrl.u32 %v1214, 7
    %v1216 = vsub.s32 %v1213, %v1215
    %v1217 = vrot.slane %v1207, %v1216
    %v1219 = vunpack.c.l.s4 1966171168
    %v1220 = vunpack.c.0.s8 %v1219
    %v1221 = vlaneseq
    %v1222 = vshrl.u32 %v1221, 7
    %v1223 = vsub.s32 %v1220, %v1222
    %v1224 = vrot.slane %v1208, %v1223
    %v1226 = vunpack.c.l.s4 1966171168
    %v1227 = vunpack.c.0.s8 %v1226
    %v1228 = vlaneseq
    %v1229 = vshrl.u32 %v1228, 7
    %v1230 = vsub.s32 %v1227, %v1229
    %v1231 = vrot.slane %v1209, %v1230
    %v1233 = vunpack.c.l.s4 1966171168
    %v1234 = vunpack.c.0.s8 %v1233
    %v1235 = vlaneseq
    %v1236 = vshrl.u32 %v1235, 7
    %v1237 = vsub.s32 %v1234, %v1236
    %v1238 = vrot.slane %v1210, %v1237
    %v1239 = vcombine.low %v1217, %v1224
    %v1240 = vcombine.low %v1231, %v1238
    %v1242 = vunpack.c.l.s4 1966171168
    %v1243 = vunpack.c.0.s8 %v1242
    %v1244 = vlaneseq
    %v1245 = vshrl.u32 %v1244, 7
    %v1246 = vsub.s32 %v1243, %v1245
    %v1247 = vrot.slane %v1239, %v1246
    %v1249 = vunpack.c.l.s4 1966171168
    %v1250 = vunpack.c.0.s8 %v1249
    %v1251 = vlaneseq
    %v1252 = vshrl.u32 %v1251, 7
    %v1253 = vsub.s32 %v1250, %v1252
    %v1254 = vrot.slane %v1240, %v1253
    %v1255 = vcombine.low %v1247, %v1254
    %s1256 = scalar_lea.vmem %s1, 48
    %v1257 = vld [vmem:[%s1256] sm:$0xff]
    %v1258 = vsel %vm230, %v1255, %v1257
    %1259 = vst [vmem:[%s1256] sm:$0xff] %v1258
    %vm1260 = vcmp.gt.f32.partialorder %v1093, %v33
    %vm1261 = vcmp.gt.f32.partialorder %v1094, %v34
    %v1262 = vsel %vm1260, 4.5e-05, %v1093
    %v1263 = vsel %vm1261, 4.5e-05, %v1094
    %v1264 = vadd.f32 %v1262, 1e-06
    %v1265 = vadd.f32 %v1263, 1e-06
    %vm1266 = vcmp.gt.f32.partialorder %v1264, %v31
    %vm1267 = vcmp.gt.f32.partialorder %v1265, %v32
    %v1268 = vsel %vm1266, 1, 0
    %v1269 = vsel %vm1267, 1, 0
    %v1270 = vcombine.high %v1268, %v1268
    %v1272 = vunpack.c.l.s4 1983009808
    %v1273 = vunpack.c.0.s8 %v1272
    %v1274 = vlaneseq
    %v1275 = vshrl.u32 %v1274, 7
    %v1276 = vsub.s32 %v1273, %v1275
    %v1277 = vrot.slane %v1268, %v1276
    %v1279 = vunpack.c.l.s4 1983009808
    %v1280 = vunpack.c.0.s8 %v1279
    %v1281 = vlaneseq
    %v1282 = vshrl.u32 %v1281, 7
    %v1283 = vsub.s32 %v1280, %v1282
    %v1284 = vrot.slane %v1270, %v1283
    %v1285 = vcombine.high %v1269, %v1269
    %v1287 = vunpack.c.l.s4 1983009808
    %v1288 = vunpack.c.0.s8 %v1287
    %v1289 = vlaneseq
    %v1290 = vshrl.u32 %v1289, 7
    %v1291 = vsub.s32 %v1288, %v1290
    %v1292 = vrot.slane %v1269, %v1291
    %v1294 = vunpack.c.l.s4 1983009808
    %v1295 = vunpack.c.0.s8 %v1294
    %v1296 = vlaneseq
    %v1297 = vshrl.u32 %v1296, 7
    %v1298 = vsub.s32 %v1295, %v1297
    %v1299 = vrot.slane %v1285, %v1298
    %vm1300 = vcmp.ne.s32.totalorder %v1277, 0
    %vm1301 = vcmp.ne.s32.totalorder %v1284, 0
    %vm1302 = vcmp.ne.s32.totalorder %v1292, 0
    %vm1303 = vcmp.ne.s32.totalorder %v1299, 0
    %v1304 = vsel %vm1300, 1, 0
    %v1305 = vsel %vm1301, 1, 0
    %v1306 = vsel %vm1302, 1, 0
    %v1307 = vsel %vm1303, 1, 0
    %v1308 = vpack.c.b16 %v1305, %v1304
    %v1309 = vpack.c.b16 %v1307, %v1306
    %v1310 = vpack.c.b8 %v1309, %v1308
    %vm1311 = vnez %v1310
    %v1312 = vsel %vm1311, 16843009, 0
    %v1313 = vcombine.high %v1312, %v1312
    %v1315 = vunpack.c.l.s4 1966171168
    %v1316 = vunpack.c.0.s8 %v1315
    %v1317 = vlaneseq
    %v1318 = vshrl.u32 %v1317, 7
    %v1319 = vsub.s32 %v1316, %v1318
    %v1320 = vrot.slane %v1312, %v1319
    %v1322 = vunpack.c.l.s4 1966171168
    %v1323 = vunpack.c.0.s8 %v1322
    %v1324 = vlaneseq
    %v1325 = vshrl.u32 %v1324, 7
    %v1326 = vsub.s32 %v1323, %v1325
    %v1327 = vrot.slane %v1313, %v1326
    %v1328 = vcombine.high %v1320, %v1320
    %v1329 = vcombine.high %v1327, %v1327
    %v1331 = vunpack.c.l.s4 1966171168
    %v1332 = vunpack.c.0.s8 %v1331
    %v1333 = vlaneseq
    %v1334 = vshrl.u32 %v1333, 7
    %v1335 = vsub.s32 %v1332, %v1334
    %v1336 = vrot.slane %v1320, %v1335
    %v1338 = vunpack.c.l.s4 1966171168
    %v1339 = vunpack.c.0.s8 %v1338
    %v1340 = vlaneseq
    %v1341 = vshrl.u32 %v1340, 7
    %v1342 = vsub.s32 %v1339, %v1341
    %v1343 = vrot.slane %v1327, %v1342
    %v1345 = vunpack.c.l.s4 1966171168
    %v1346 = vunpack.c.0.s8 %v1345
    %v1347 = vlaneseq
    %v1348 = vshrl.u32 %v1347, 7
    %v1349 = vsub.s32 %v1346, %v1348
    %v1350 = vrot.slane %v1328, %v1349
    %v1352 = vunpack.c.l.s4 1966171168
    %v1353 = vunpack.c.0.s8 %v1352
    %v1354 = vlaneseq
    %v1355 = vshrl.u32 %v1354, 7
    %v1356 = vsub.s32 %v1353, %v1355
    %v1357 = vrot.slane %v1329, %v1356
    %v1358 = vcombine.high %v1336, %v1336
    %v1359 = vcombine.high %v1343, %v1343
    %v1360 = vcombine.high %v1350, %v1350
    %v1361 = vcombine.high %v1357, %v1357
    %vm1362 = vnez %v1336
    %vm1363 = vnez %v1350
    %vm1364 = vnez %v1358
    %vm1365 = vnez %v1360
    %vm1366 = vnez %v1343
    %vm1367 = vnez %v1357
    %vm1368 = vnez %v1359
    %vm1369 = vnez %v1361
    %v1370 = vsel %vm1362, 16843009, 0
    %v1371 = vsel %vm1363, 16843009, 0
    %v1372 = vsel %vm1364, 16843009, 0
    %v1373 = vsel %vm1365, 16843009, 0
    %v1374 = vsel %vm1366, 16843009, 0
    %v1375 = vsel %vm1367, 16843009, 0
    %v1376 = vsel %vm1368, 16843009, 0
    %v1377 = vsel %vm1369, 16843009, 0
    %v1378 = vcombine.low %v1370, %v1371
    %v1379 = vcombine.low %v1372, %v1373
    %v1380 = vcombine.low %v1374, %v1375
    %v1381 = vcombine.low %v1376, %v1377
    %v1383 = vunpack.c.l.s4 1966171168
    %v1384 = vunpack.c.0.s8 %v1383
    %v1385 = vlaneseq
    %v1386 = vshrl.u32 %v1385, 7
    %v1387 = vsub.s32 %v1384, %v1386
    %v1388 = vrot.slane %v1378, %v1387
    %v1390 = vunpack.c.l.s4 1966171168
    %v1391 = vunpack.c.0.s8 %v1390
    %v1392 = vlaneseq
    %v1393 = vshrl.u32 %v1392, 7
    %v1394 = vsub.s32 %v1391, %v1393
    %v1395 = vrot.slane %v1379, %v1394
    %v1397 = vunpack.c.l.s4 1966171168
    %v1398 = vunpack.c.0.s8 %v1397
    %v1399 = vlaneseq
    %v1400 = vshrl.u32 %v1399, 7
    %v1401 = vsub.s32 %v1398, %v1400
    %v1402 = vrot.slane %v1380, %v1401
    %v1404 = vunpack.c.l.s4 1966171168
    %v1405 = vunpack.c.0.s8 %v1404
    %v1406 = vlaneseq
    %v1407 = vshrl.u32 %v1406, 7
    %v1408 = vsub.s32 %v1405, %v1407
    %v1409 = vrot.slane %v1381, %v1408
    %v1410 = vcombine.low %v1388, %v1395
    %v1411 = vcombine.low %v1402, %v1409
    %v1413 = vunpack.c.l.s4 1966171168
    %v1414 = vunpack.c.0.s8 %v1413
    %v1415 = vlaneseq
    %v1416 = vshrl.u32 %v1415, 7
    %v1417 = vsub.s32 %v1414, %v1416
    %v1418 = vrot.slane %v1410, %v1417
    %v1420 = vunpack.c.l.s4 1966171168
    %v1421 = vunpack.c.0.s8 %v1420
    %v1422 = vlaneseq
    %v1423 = vshrl.u32 %v1422, 7
    %v1424 = vsub.s32 %v1421, %v1423
    %v1425 = vrot.slane %v1411, %v1424
    %v1426 = vcombine.low %v1418, %v1425
    %s1427 = scalar_lea.vmem %s1, 56
    %v1428 = vld [vmem:[%s1427] sm:$0xff]
    %v1429 = vsel %vm230, %v1426, %v1428
    %1430 = vst [vmem:[%s1427] sm:$0xff] %v1429
    %vm1431 = vcmp.gt.f32.partialorder %v1264, %v33
    %vm1432 = vcmp.gt.f32.partialorder %v1265, %v34
    %v1433 = vsel %vm1431, 4.5e-05, %v1264
    %v1434 = vsel %vm1432, 4.5e-05, %v1265
    %1435 = vst [vmem:[#allocation5] sm:$0xff] %v1433
    %1436 = vst [vmem:[#allocation5 + $0x8] sm:$0xff] %v1434
    // Predicated region
    $region14: #{input_group_rollout.1} parent=1 // pred_check
      _
    $region15: #{input_group_rollout.1} parent=1 // pred_check_branch
      %1438 = sbr.rel (0) target = $region17
    $region16: #{input_group_rollout.1} parent=1 // pred_region
      _
    $region17: #{input_group_rollout.1} parent=1 // pred_fallthru
      _
    // Predicated region
    $region18: #{input_group_rollout.1} parent=1 // pred_check
      _
    $region19: #{input_group_rollout.1} parent=1 // pred_check_branch
      %1440 = sbr.rel (0) target = $region21
    $region20: #{input_group_rollout.1} parent=1 // pred_region
      %s1442 = ssub.s32 256, 256
      %1443 = vsyncadd [#allocation4], %s1442
      %s1445 = sshll.u32 [#allocation5], 4
      %s1446 = int_to_ptr.vmem [resolvable:$true] %s1445
      %1448 = dma.vmem_to_hbm [thread:$0]  %s1446, 256, %s2, [#allocation4]
    $region21: #{input_group_rollout.1} parent=1 // pred_fallthru
      _
    // Predicated region
    $region22: #{input_group_rollout.1} parent=1 // pred_check
      _
    $region23: #{input_group_rollout.1} parent=1 // pred_check_branch
      %1450 = sbr.rel (0) target = $region25
    $region24: #{input_group_rollout.1} parent=1 // pred_region
      _
    $region25: #{input_group_rollout.1} parent=1 // pred_fallthru
      _
    // Predicated region
    $region26: #{input_group_rollout.1} parent=1 // pred_check
      _
    $region27: #{input_group_rollout.1} parent=1 // pred_check_branch
      %1452 = sbr.rel (0) target = $region29
    $region28: #{input_group_rollout.1} parent=1 // pred_region
      %1453 = dma.done [#allocation4], 256
    $region29: #{input_group_rollout.1} parent=1 // pred_fallthru
      _
    %1454 = vsyncpa [#allocation3], 1
    %1455 = vsyncpa [#allocation4], 1

</llo_original>
